<compile_context>
chip_gen: v6e
topology: v6e:2x2x1
jax: 0.10.0
libtpu: 0.0.40
codegen_flags: <defaults>
</compile_context>

<pallas_src>
import functools

import jax
import jax.numpy as jnp
from jax.experimental import pallas as pl
from jax.experimental.pallas import tpu as pltpu


def _lukasiewicz_kernel(scalars_ref, preds_ref, ew_ref, gsum_ref, gexp_ref, out_ref):
    # scalars_ref : SMEM (2,)       [clip(w,0,1)/l, 1 - n_neg]
    # preds_ref   : VMEM (tr, 128)  packed pre-activations (G groundings x L literals / row)
    # ew_ref      : VMEM (tr, G)    per-grounding edge weights (one lane per packed slot)
    # gsum_ref    : VMEM (128, 128) gsum[p, c] = signs[p % L] if p//L == c//L else 0
    # gexp_ref    : VMEM (G, 128)   gexp[k, c] = signs[c % L] if c//L == k    else 0
    # out_ref     : VMEM (tr, 128)  packed boost deltas
    scale = scalars_ref[0]
    c0 = scalars_ref[1]

    # Per-grounding signed literal sum, replicated across that grounding's L lanes
    # (segmented lane reduction expressed as one dense MXU matmul).
    sums = jnp.dot(preds_ref[...], gsum_ref[...], preferred_element_type=jnp.float32)

    # Lukasiewicz t-conorm residual gate:
    #   (sums + n_neg < 1) * (1 - n_neg - sums) * clip(w,0,1) / l
    gate = jnp.where(sums < c0, (c0 - sums) * scale, 0.0)

    # edge_weight broadcast to each grounding's L lanes with the literal signs
    # folded into the constant expansion matrix (second tiny MXU matmul).
    ew_signed = jnp.dot(ew_ref[...], gexp_ref[...], preferred_element_type=jnp.float32)

    out_ref[...] = gate * ew_signed


def _round_up(x: int, m: int) -> int:
    return ((x + m - 1) // m) * m


@functools.partial(jax.jit, static_argnames=("block_groundings",))
def lukasiewicz_boost_conorm(selected_predicates, signs, edge_weight, clause_weight,
                             *, block_groundings: int = 8192):
    """selected_predicates: [b, l] f32, signs: [l] f32, edge_weight: [b] f32,
    clause_weight: scalar. Returns the [b, l] boost deltas (f32)."""
    preds = jnp.asarray(selected_predicates, jnp.float32)
    signs = jnp.asarray(signs, jnp.float32)
    ew = jnp.asarray(edge_weight, jnp.float32).reshape(-1)
    b, l = preds.shape
    if l > 128:
        # TODO(synk): clauses with >128 literals need a second (sublane) reduction level.
        raise NotImplementedError("kernel supports clauses with at most 128 literals")

    # Pack G = 128 // L groundings per lane-dense 128-wide row.
    L = 1 << (l - 1).bit_length()              # smallest power of two >= l (divides 128)
    G = 128 // L
    b_pad = _round_up(b, G)
    pad_b, pad_l = b_pad - b, L - l
    if pad_b or pad_l:
        # Fallback path only (materializes padded copies -> extra HBM passes).
        # Zero-padded signs/preds/ew contribute nothing to sums or outputs.
        preds = jnp.pad(preds, ((0, pad_b), (0, pad_l)))
        signs_p = jnp.pad(signs, (0, pad_l))
        ew = jnp.pad(ew, (0, pad_b))
    else:
        signs_p = signs

    rows = b_pad // G
    preds_p = preds.reshape(rows, 128)         # bitcast (row-major regrouping), no copy
    ew_p = ew.reshape(rows, G)                 # bitcast

    # Scalars prefetched into SMEM: scale = clip(w,0,1)/l and c0 = 1 - #negative literals.
    # (The PyTorch module clamps the Parameter in place; here the clip is functional.)
    scale = jnp.clip(jnp.asarray(clause_weight, jnp.float32), 0.0, 1.0) / jnp.float32(l)
    n_neg = jnp.sum((signs_p < 0.0).astype(jnp.float32))
    scalars = jnp.stack([scale, 1.0 - n_neg])

    # Constant +-1/0 matrices driving the two MXU matmuls (tiny, built once per call).
    lane = jnp.arange(128)
    grp = lane // L                                        # grounding slot of each lane
    signs_tiled = jnp.tile(signs_p, G)                     # (128,) signs[c % L]
    gsum = jnp.where(grp[None, :] == grp[:, None], signs_tiled[:, None], 0.0)             # (128,128)
    gexp = jnp.where(grp[None, :] == jnp.arange(G)[:, None], signs_tiled[None, :], 0.0)   # (G, 128)

    # Row tile: large tiles (default 8192 groundings/step) amortize per-step overhead;
    # when the problem is small, still split into >= 2 steps so the "parallel" grid
    # axis can occupy both v7x TensorCores. tr is a multiple of 8 (or the full dim).
    cap = max(8, (block_groundings // G) // 8 * 8)
    if rows <= 16:
        tr = rows
    else:
        tr = min(cap, _round_up((rows + 1) // 2, 8))
    n_tiles = -(-rows // tr)                               # ragged last block is fine

    grid_spec = pltpu.PrefetchScalarGridSpec(
        num_scalar_prefetch=1,                             # scalars land in SMEM
        grid=(n_tiles,),
        in_specs=[
            pl.BlockSpec((tr, 128), lambda i, s: (i, 0)),  # packed predicates
            pl.BlockSpec((tr, G), lambda i, s: (i, 0)),    # packed edge weights
            pl.BlockSpec((128, 128), lambda i, s: (0, 0)),  # reduction matrix (resident)
            pl.BlockSpec((G, 128), lambda i, s: (0, 0)),    # expansion matrix (resident)
        ],
        out_specs=pl.BlockSpec((tr, 128), lambda i, s: (i, 0)),
    )

    out_p = pl.pallas_call(
        _lukasiewicz_kernel,
        out_shape=jax.ShapeDtypeStruct((rows, 128), jnp.float32),
        grid_spec=grid_spec,
        compiler_params=pltpu.CompilerParams(
            dimension_semantics=("parallel",),
            vmem_limit_bytes=32 * 1024 * 1024,
        ),
    )(scalars, preds_p, ew_p, gsum, gexp)

    # Bitcast back to the module's [b, l] frame (slice is a no-op on the fast path).
    return out_p.reshape(b_pad, L)[:b, :l]


def _reference(selected_predicates, signs, edge_weight, clause_weight):
    w = jnp.clip(jnp.float32(clause_weight), 0.0, 1.0)
    clause = (signs < 0).astype(jnp.float32) + signs * selected_predicates
    sums = jnp.sum(clause, axis=1)
    l = clause.shape[1]
    row = (sums < 1).astype(jnp.float32) * (1.0 - sums) * w / l
    return row[:, None] * signs[None, :] * edge_weight[:, None]


if __name__ == "__main__":
    key = jax.random.PRNGKey(0)
    k1, k2, k3 = jax.random.split(key, 3)

    # groundings (multiple of G=8 -> copy-free fast path, not a multiple of the
    # row tile -> exercises the ragged last block and a 2-step parallel grid),
    # literals per clause.
    b, l = 1000, 16
    selected_predicates = jax.random.normal(k1, (b, l), dtype=jnp.float32)
    signs = jnp.where(jax.random.uniform(k2, (l,)) < 0.5, -1.0, 1.0).astype(jnp.float32)
    edge_weight = jax.random.uniform(k3, (b,), dtype=jnp.float32)
    initial_clause_weight = 0.5                 # deterministic parameter init

    out = lukasiewicz_boost_conorm(selected_predicates, signs, edge_weight,
                                   initial_clause_weight)
    out = jax.block_until_ready(out)

    ref = _reference(selected_predicates, signs, edge_weight, initial_clause_weight)
    assert out.shape == (b, l) and out.dtype == jnp.float32
    # Tolerance leaves headroom for the MXU's multi-pass f32 accumulation in the
    # two constant +-1/0 matmuls; observed error is ~1e-6 in practice.
    assert jnp.allclose(out, ref, atol=2e-3, rtol=1e-2), float(jnp.max(jnp.abs(out - ref)))

    print("KERNEL_OK")
</pallas_src>

<mosaic_0001>
module attributes {stable_mosaic.version = 11 : i64} {
  func.func @_lukasiewicz_kernel(%arg0: i32, %arg1: memref<2xf32, #tpu.memory_space<smem>>, %arg2: memref<64x128xf32, #tpu.memory_space<vmem>>, %arg3: memref<64x8xf32, #tpu.memory_space<vmem>>, %arg4: memref<128x128xf32, #tpu.memory_space<vmem>>, %arg5: memref<8x128xf32, #tpu.memory_space<vmem>>, %arg6: memref<64x128xf32, #tpu.memory_space<vmem>>) attributes {dimension_semantics = [#tpu.dimension_semantics<parallel>], iteration_bounds = array<i64: 2>, scalar_prefetch = 1 : i64, scratch_operands = 0 : i64, tpu.core_type = #tpu.core_type<tc>, window_params = [{transform_indices = @transform_0, window_bounds = array<i64: 64, 128>}, {transform_indices = @transform_1, window_bounds = array<i64: 64, 8>}, {pipeline_mode = #tpu.pipeline_mode<synchronous>, transform_indices = @transform_2, window_bounds = array<i64: 128, 128>}, {pipeline_mode = #tpu.pipeline_mode<synchronous>, transform_indices = @transform_3, window_bounds = array<i64: 8, 128>}, {transform_indices = @transform_4, window_bounds = array<i64: 64, 128>}]} {
    %c0 = arith.constant 0 : index
    %0 = memref.load %arg1[%c0] : memref<2xf32, #tpu.memory_space<smem>>
    %c1 = arith.constant 1 : index
    %1 = memref.load %arg1[%c1] : memref<2xf32, #tpu.memory_space<smem>>
    %c0_0 = arith.constant 0 : index
    %c0_1 = arith.constant 0 : index
    %2 = vector.load %arg2[%c0_0, %c0_1] : memref<64x128xf32, #tpu.memory_space<vmem>>, vector<64x128xf32>
    %c0_2 = arith.constant 0 : index
    %c0_3 = arith.constant 0 : index
    %3 = vector.load %arg4[%c0_2, %c0_3] : memref<128x128xf32, #tpu.memory_space<vmem>>, vector<128x128xf32>
    %cst = arith.constant dense<0.000000e+00> : vector<64x128xf32>
    %4 = tpu.matmul %2, %3, %cst {dimension_numbers = #tpu.dot_dimension_numbers<[1], [0], [0], [1], [0, 0, 1, 1], [], []>} : vector<64x128xf32>, vector<128x128xf32>, vector<64x128xf32> -> vector<64x128xf32>
    %5 = vector.broadcast %1 : f32 to vector<64x128xf32>
    %6 = arith.cmpf olt, %4, %5 : vector<64x128xf32>
    %7 = vector.broadcast %1 : f32 to vector<64x128xf32>
    %8 = arith.subf %7, %4 : vector<64x128xf32>
    %9 = vector.broadcast %0 : f32 to vector<64x128xf32>
    %10 = arith.mulf %8, %9 : vector<64x128xf32>
    %cst_4 = arith.constant 0.000000e+00 : f32
    %11 = vector.broadcast %cst_4 : f32 to vector<64x128xf32>
    %12 = arith.select %6, %10, %11 : vector<64x128xi1>, vector<64x128xf32>
    %c0_5 = arith.constant 0 : index
    %c0_6 = arith.constant 0 : index
    %13 = vector.load %arg3[%c0_5, %c0_6] : memref<64x8xf32, #tpu.memory_space<vmem>>, vector<64x8xf32>
    %c0_7 = arith.constant 0 : index
    %c0_8 = arith.constant 0 : index
    %14 = vector.load %arg5[%c0_7, %c0_8] : memref<8x128xf32, #tpu.memory_space<vmem>>, vector<8x128xf32>
    %cst_9 = arith.constant dense<0.000000e+00> : vector<64x128xf32>
    %15 = tpu.matmul %13, %14, %cst_9 {dimension_numbers = #tpu.dot_dimension_numbers<[1], [0], [0], [1], [0, 0, 1, 1], [], []>} : vector<64x8xf32>, vector<8x128xf32>, vector<64x128xf32> -> vector<64x128xf32>
    %16 = arith.mulf %12, %15 : vector<64x128xf32>
    %c0_10 = arith.constant 0 : index
    %c0_11 = arith.constant 0 : index
    %17 = vector.load %arg6[%c0_10, %c0_11] : memref<64x128xf32, #tpu.memory_space<vmem>>, vector<64x128xf32>
    tpu.vector_store %arg6[%c0_10, %c0_11], %16 {strides = array<i32>} : memref<64x128xf32, #tpu.memory_space<vmem>>, vector<64x128xf32>,
    return
  }
  func.func @transform_0(%arg0: i32, %arg1: memref<2xf32, #tpu.memory_space<smem>>) -> (i32, i32) {
    %c0_i32 = arith.constant 0 : i32
    %c0_i32_0 = arith.constant 0 : i32
    return %arg0, %c0_i32 : i32, i32
  }
  func.func @transform_1(%arg0: i32, %arg1: memref<2xf32, #tpu.memory_space<smem>>) -> (i32, i32) {
    %c0_i32 = arith.constant 0 : i32
    %c0_i32_0 = arith.constant 0 : i32
    return %arg0, %c0_i32 : i32, i32
  }
  func.func @transform_2(%arg0: i32, %arg1: memref<2xf32, #tpu.memory_space<smem>>) -> (i32, i32) {
    %c0_i32 = arith.constant 0 : i32
    %c0_i32_0 = arith.constant 0 : i32
    %c0_i32_1 = arith.constant 0 : i32
    return %c0_i32, %c0_i32_0 : i32, i32
  }
  func.func @transform_3(%arg0: i32, %arg1: memref<2xf32, #tpu.memory_space<smem>>) -> (i32, i32) {
    %c0_i32 = arith.constant 0 : i32
    %c0_i32_0 = arith.constant 0 : i32
    %c0_i32_1 = arith.constant 0 : i32
    return %c0_i32, %c0_i32_0 : i32, i32
  }
  func.func @transform_4(%arg0: i32, %arg1: memref<2xf32, #tpu.memory_space<smem>>) -> (i32, i32) {
    %c0_i32 = arith.constant 0 : i32
    %c0_i32_0 = arith.constant 0 : i32
    return %arg0, %c0_i32 : i32, i32
  }
}

</mosaic_0001>

<llo_original>
// kernel: tile.9
$region0: #{tile.9}
  #allocation0 [shape = 's32[1]{0}', space=sflag, size = 0x4, scoped, tag = 'scoped memory for tile.9']
  %s0 = inlined_call_operand.vmem [shape: f32[16], index: 0, kind: input, shape index: {}]
  %s1 = inlined_call_operand.vmem [shape: f32[8,16], index: 1, kind: output, shape index: {}]
  // Predicated region
  $region2: #{tile.9} parent=0 // pred_check
    _
  $region3: #{tile.9} parent=0 // pred_check_branch
    %3 = sbr.rel (0) target = $region5
  $region4: #{tile.9} parent=0 // pred_region
    _
  $region5: #{tile.9} parent=0 // pred_fallthru
    _
  %v4 = vld [vmem:[%s0] ss:$0 sm:$0xff]
  %5 = vst [vmem:[%s1] sm:$0xff] %v4

// kernel: lukasiewicz_boost_conorm.1
$region0: #{lukasiewicz_boost_conorm.1}
  #allocation0 [shape = 'u32[]', space=smem, size = 0x4, offset = 0x4, fixed_abs, tag = 'smem constant byte address 0x4 - core index']
  #allocation1 [shape = 'u32[144,128]{1,0:T(1,128)}', space=vmem, size = 0x12000, scoped, tag = 'internal scratch']
  #allocation2 [shape = 's32[1]{0}', space=sflag, size = 0x4, scoped, tag = 'scoped memory for lukasiewicz_boost_conorm.1']
  #allocation3 [shape = 'u8[512]{0}', space=smem, size = 0x200, scoped, tag = 'prefetched SMEM operand 0']
  %s0 = inlined_call_operand.vmem [shape: f32[2], index: 0, kind: input, shape index: {}]
  %s1 = inlined_call_operand.vmem [shape: f32[125,128], index: 1, kind: input, shape index: {}]
  %s2 = inlined_call_operand.vmem [shape: f32[125,8], index: 2, kind: input, shape index: {}]
  %s3 = inlined_call_operand.vmem [shape: f32[128,128], index: 3, kind: input, shape index: {}]
  %s4 = inlined_call_operand.vmem [shape: f32[8,128], index: 4, kind: input, shape index: {}]
  %s5 = inlined_call_operand.vmem [shape: f32[125,128], index: 5, kind: output, shape index: {}]
  %s6 = sld [smem:[#allocation0]]
  $region49: #{lukasiewicz_boost_conorm.1} parent=0
    _
  %s8 = ssub.s32 1, %s6
  %s9 = scalar_select 0, %s8, %s6
  %s10 = sshll.u32 %s0, 4
  %s11 = int_to_ptr.vmem [resolvable:$true] %s10
  %13 = dma.vmem_to_smem %s11, 16, [#allocation3], [#allocation2]
  %14 = dma.done [#allocation2], 16
  %15 = sfence
  loop: start=0, step=1, limit=4
  $region2: #{lukasiewicz_boost_conorm.1} parent=0 // loop_pre_header
    _
  $region3: #{lukasiewicz_boost_conorm.1} parent=0 // loop_header
    %s17 = sphi 0, %s21
    %p18 = scmp.ge.s32.totalorder %s17, 4
    %s27 = sphi 0, %s29
    %s30 = sphi 0, %s27
    %s31 = sphi 0, %s30
    %s47 = sphi 0, %s31
    %s53 = sphi 0, %s55
    %s56 = sphi 0, %s53
    %s57 = sphi 0, %s56
    %s73 = sphi 0, %s57
    %s77 = sphi 0, %s77
    %s79 = sphi 0, %s77
    %s80 = sphi 0, %s79
    %s94 = sphi 0, %s80
    %s98 = sphi 0, %s98
    %s100 = sphi 0, %s98
    %s101 = sphi 0, %s100
    %s115 = sphi 0, %s101
    %s121 = sphi 0, %s123
    %s124 = sphi 0, %s121
    %s125 = sphi 0, %s124
    %s141 = sphi 0, %s125
  $region4: #{lukasiewicz_boost_conorm.1} parent=0 // loop_header_branch
    %20 = sbr.rel (%p18) target = $region8
  $region5: #{lukasiewicz_boost_conorm.1} parent=0 // loop_body
    %s22 = ssub.s32 %s17, 1
    %s23 = ssub.s32 %s17, 2
    %s24 = sadd.s32 %s17, 1
    %s25 = ssub.s32 %s17, %s24
    %p26 = scmp.eq.s32.totalorder %s25, 0
    %s28 = sadd.s32 %s27, 1
    %s29 = scalar_select %p26, %s27, %s28
    %p32 = pneg %p26
    %p33 = scmp.eq.s32.totalorder %s17, 1
    %p34 = por %p32, %p33
    %p35 = scmp.ne.s32.totalorder %s27, %s30
    %p36 = scmp.eq.s32.totalorder %s17, 0
    %p37 = por %p35, %p36
    %p38 = scmp.ne.s32.totalorder %s27, %s30
    %p39 = scmp.eq.s32.totalorder %s22, 1
    %p40 = por %p38, %p39
    %p41 = scmp.ne.s32.totalorder %s30, %s31
    %p42 = scmp.eq.s32.totalorder %s22, 0
    %p43 = por %p41, %p42
    %p44 = scmp.ne.s32.totalorder %s30, %s31
    %p45 = scmp.eq.s32.totalorder %s23, 1
    %p46 = por %p44, %p45
    %p48 = scmp.ne.s32.totalorder %s31, %s47
    %p49 = scmp.eq.s32.totalorder %s23, 0
    %p50 = por %p48, %p49
    %s51 = ssub.s32 %s17, %s24
    %p52 = scmp.eq.s32.totalorder %s51, 0
    %s54 = sadd.s32 %s53, 1
    %s55 = scalar_select %p52, %s53, %s54
    %p58 = pneg %p52
    %p59 = scmp.eq.s32.totalorder %s17, 1
    %p60 = por %p58, %p59
    %p61 = scmp.ne.s32.totalorder %s53, %s56
    %p62 = scmp.eq.s32.totalorder %s17, 0
    %p63 = por %p61, %p62
    %p64 = scmp.ne.s32.totalorder %s53, %s56
    %p65 = scmp.eq.s32.totalorder %s22, 1
    %p66 = por %p64, %p65
    %p67 = scmp.ne.s32.totalorder %s56, %s57
    %p68 = scmp.eq.s32.totalorder %s22, 0
    %p69 = por %p67, %p68
    %p70 = scmp.ne.s32.totalorder %s56, %s57
    %p71 = scmp.eq.s32.totalorder %s23, 1
    %p72 = por %p70, %p71
    %p74 = scmp.ne.s32.totalorder %s57, %s73
    %p75 = scmp.eq.s32.totalorder %s23, 0
    %p76 = por %p74, %p75
    %s78 = sadd.s32 %s77, 1
    %p81 = scmp.eq.s32.totalorder %s17, 1
    %p82 = scmp.ne.s32.totalorder %s77, %s79
    %p83 = scmp.eq.s32.totalorder %s17, 0
    %p84 = por %p82, %p83
    %p85 = scmp.ne.s32.totalorder %s77, %s79
    %p86 = scmp.eq.s32.totalorder %s22, 1
    %p87 = por %p85, %p86
    %p88 = scmp.ne.s32.totalorder %s79, %s80
    %p89 = scmp.eq.s32.totalorder %s22, 0
    %p90 = por %p88, %p89
    %p91 = scmp.ne.s32.totalorder %s79, %s80
    %p92 = scmp.eq.s32.totalorder %s23, 1
    %p93 = por %p91, %p92
    %p95 = scmp.ne.s32.totalorder %s80, %s94
    %p96 = scmp.eq.s32.totalorder %s23, 0
    %p97 = por %p95, %p96
    %s99 = sadd.s32 %s98, 1
    %p102 = scmp.eq.s32.totalorder %s17, 1
    %p103 = scmp.ne.s32.totalorder %s98, %s100
    %p104 = scmp.eq.s32.totalorder %s17, 0
    %p105 = por %p103, %p104
    %p106 = scmp.ne.s32.totalorder %s98, %s100
    %p107 = scmp.eq.s32.totalorder %s22, 1
    %p108 = por %p106, %p107
    %p109 = scmp.ne.s32.totalorder %s100, %s101
    %p110 = scmp.eq.s32.totalorder %s22, 0
    %p111 = por %p109, %p110
    %p112 = scmp.ne.s32.totalorder %s100, %s101
    %p113 = scmp.eq.s32.totalorder %s23, 1
    %p114 = por %p112, %p113
    %p116 = scmp.ne.s32.totalorder %s101, %s115
    %p117 = scmp.eq.s32.totalorder %s23, 0
    %p118 = por %p116, %p117
    %s119 = ssub.s32 %s17, %s24
    %p120 = scmp.eq.s32.totalorder %s119, 0
    %s122 = sadd.s32 %s121, 1
    %s123 = scalar_select %p120, %s121, %s122
    %p126 = pneg %p120
    %p127 = scmp.eq.s32.totalorder %s17, 1
    %p128 = por %p126, %p127
    %p129 = scmp.ne.s32.totalorder %s121, %s124
    %p130 = scmp.eq.s32.totalorder %s17, 0
    %p131 = por %p129, %p130
    %p132 = scmp.ne.s32.totalorder %s121, %s124
    %p133 = scmp.eq.s32.totalorder %s22, 1
    %p134 = por %p132, %p133
    %p135 = scmp.ne.s32.totalorder %s124, %s125
    %p136 = scmp.eq.s32.totalorder %s22, 0
    %p137 = por %p135, %p136
    %p138 = scmp.ne.s32.totalorder %s124, %s125
    %p139 = scmp.eq.s32.totalorder %s23, 1
    %p140 = por %p138, %p139
    %p142 = scmp.ne.s32.totalorder %s125, %s141
    %p143 = scmp.eq.s32.totalorder %s23, 0
    %p144 = por %p142, %p143
    %p145 = scmp.le.s32.totalorder 1, %s17
    %p146 = scmp.lt.s32.totalorder %s17, 3
    %p147 = pnand %p145, %p146
    %p148 = pneg %p147
    // Predicated region
    $region9: #{lukasiewicz_boost_conorm.1} parent=5 // pred_check
      _
    $region10: #{lukasiewicz_boost_conorm.1} parent=5 // pred_check_branch
      %150 = sbr.rel (%p147) target = $region12
    $region11: #{lukasiewicz_boost_conorm.1} parent=5 // pred_region
      %s151 = ssub.s32 %s17, 1
      // Predicated region
      $region13: #{lukasiewicz_boost_conorm.1} parent=11 // pred_check
        %p152 = pneg %p90
      $region14: #{lukasiewicz_boost_conorm.1} parent=11 // pred_check_branch
        %154 = sbr.rel (%p152) target = $region16
      $region15: #{lukasiewicz_boost_conorm.1} parent=11 // pred_region
        _
      $region16: #{lukasiewicz_boost_conorm.1} parent=11 // pred_fallthru
        _
      // Predicated region
      $region17: #{lukasiewicz_boost_conorm.1} parent=11 // pred_check
        %p155 = pneg %p111
      $region18: #{lukasiewicz_boost_conorm.1} parent=11 // pred_check_branch
        %157 = sbr.rel (%p155) target = $region20
      $region19: #{lukasiewicz_boost_conorm.1} parent=11 // pred_region
        _
      $region20: #{lukasiewicz_boost_conorm.1} parent=11 // pred_fallthru
        _
    $region12: #{lukasiewicz_boost_conorm.1} parent=5 // pred_fallthru
      _
    %p158 = scmp.lt.s32.totalorder %s17, 2
    // Predicated region
    $region21: #{lukasiewicz_boost_conorm.1} parent=5 // pred_check
      %p159 = pneg %p158
    $region22: #{lukasiewicz_boost_conorm.1} parent=5 // pred_check_branch
      %161 = sbr.rel (%p159) target = $region24
    $region23: #{lukasiewicz_boost_conorm.1} parent=5 // pred_region
      // Predicated region
      $region25: #{lukasiewicz_boost_conorm.1} parent=23 // pred_check
        %p162 = pneg %p37
      $region26: #{lukasiewicz_boost_conorm.1} parent=23 // pred_check_branch
        %164 = sbr.rel (%p162) target = $region28
      $region27: #{lukasiewicz_boost_conorm.1} parent=23 // pred_region
        %s165 = smul.u32 8, %s17
        %p166 = scmp.lt.s32.totalorder %s165, 15
        %s167 = scalar_select %p166, %s165, 15
        %s168 = smul.addr %s167, 8
        %s169 = scalar_lea.vmem %s1, %s168
        %s170 = smul.u32 8, %s17
      $region28: #{lukasiewicz_boost_conorm.1} parent=23 // pred_fallthru
        _
      // Predicated region
      $region29: #{lukasiewicz_boost_conorm.1} parent=23 // pred_check
        %p171 = pneg %p63
      $region30: #{lukasiewicz_boost_conorm.1} parent=23 // pred_check_branch
        %173 = sbr.rel (%p171) target = $region32
      $region31: #{lukasiewicz_boost_conorm.1} parent=23 // pred_region
        %s174 = smul.u32 8, %s17
        %p175 = scmp.lt.s32.totalorder %s174, 15
        %s176 = scalar_select %p175, %s174, 15
        %s177 = smul.addr %s176, 8
        %s178 = scalar_lea.vmem %s2, %s177
        %s179 = smul.u32 8, %s17
      $region32: #{lukasiewicz_boost_conorm.1} parent=23 // pred_fallthru
        _
    $region24: #{lukasiewicz_boost_conorm.1} parent=5 // pred_fallthru
      _
    %p180 = scmp.le.s32.totalorder 1, %s17
    %p181 = scmp.lt.s32.totalorder %s17, 3
    %p182 = pnand %p180, %p181
    %p183 = pneg %p182
    // Predicated region
    $region33: #{lukasiewicz_boost_conorm.1} parent=5 // pred_check
      _
    $region34: #{lukasiewicz_boost_conorm.1} parent=5 // pred_check_branch
      %185 = sbr.rel (%p182) target = $region36
    $region35: #{lukasiewicz_boost_conorm.1} parent=5 // pred_region
      %s186 = ssub.s32 %s17, 1
      %s187 = smul.u32 8, %s22
      %p188 = scmp.lt.s32.totalorder %s187, 15
      %s189 = scalar_select %p188, %s187, 15
      %s190 = smul.addr %s189, 8
      %s191 = scalar_lea.vmem %s1, %s190
      %p192 = pneg %p43
      %p193 = pneg %p40
      %s194 = smul.u32 8, %s22
      %p195 = scmp.lt.s32.totalorder %s194, 15
      %s196 = scalar_select %p195, %s194, 15
      %s197 = smul.addr %s196, 8
      %s198 = scalar_lea.vmem %s2, %s197
      %p199 = pneg %p69
      %p200 = pneg %p66
      %p201 = pneg %p90
      %p202 = pneg %p87
      %p203 = pneg %p111
      %p204 = pneg %p108
      %p205 = pneg %p137
      %p206 = pneg %p134
      %s207 = smul.u32 8, %s22
      %p208 = scmp.lt.s32.totalorder %s207, 15
      %s209 = scalar_select %p208, %s207, 15
      %s210 = smul.addr %s209, 8
      %s211 = scalar_lea.vmem %s5, %s210
      %s212 = smul.u32 8, %s22
      %p213 = scmp.lt.s32.totalorder %s212, 15
      %s214 = scalar_select %p213, %s212, 15
      %s215 = smul.addr %s214, 8
      %s216 = scalar_lea.vmem %s1, %s215
      %s217 = smul.u32 8, %s22
      %s218 = smul.u32 8, %s22
      %p219 = scmp.lt.s32.totalorder %s218, 15
      %s220 = scalar_select %p219, %s218, 15
      %s221 = smul.addr %s220, 8
      %s222 = scalar_lea.vmem %s2, %s221
      %s223 = smul.u32 8, %s22
      %s224 = smul.u32 8, %s22
      %p225 = scmp.lt.s32.totalorder %s224, 15
      %s226 = scalar_select %p225, %s224, 15
      %s227 = smul.addr %s226, 8
      %s228 = scalar_lea.vmem %s5, %s227
      %s229 = smul.u32 8, %s22
      %s230 = sld [smem:[#allocation3]]
      %s231 = sld [smem:[#allocation3 + $0x1]]
      %v232 = vld [vmem:[%s216] sm:$0xff]
      %v233 = vld [vmem:[%s216 + $0x8] sm:$0xff]
      %v234 = vld [vmem:[%s216 + $0x10] sm:$0xff]
      %v235 = vld [vmem:[%s216 + $0x18] sm:$0xff]
      %v236 = vld [vmem:[%s216 + $0x20] sm:$0xff]
      %v237 = vld [vmem:[%s216 + $0x28] sm:$0xff]
      %v238 = vld [vmem:[%s216 + $0x30] sm:$0xff]
      %v239 = vld [vmem:[%s216 + $0x38] sm:$0xff]
      %v240 = vld [vmem:[%s3] sm:$0xff]
      %v241 = vld [vmem:[%s3 + $0x8] sm:$0xff]
      %v242 = vld [vmem:[%s3 + $0x10] sm:$0xff]
      %v243 = vld [vmem:[%s3 + $0x18] sm:$0xff]
      %v244 = vld [vmem:[%s3 + $0x20] sm:$0xff]
      %v245 = vld [vmem:[%s3 + $0x28] sm:$0xff]
      %v246 = vld [vmem:[%s3 + $0x30] sm:$0xff]
      %v247 = vld [vmem:[%s3 + $0x38] sm:$0xff]
      %v248 = vld [vmem:[%s3 + $0x40] sm:$0xff]
      %v249 = vld [vmem:[%s3 + $0x48] sm:$0xff]
      %v250 = vld [vmem:[%s3 + $0x50] sm:$0xff]
      %v251 = vld [vmem:[%s3 + $0x58] sm:$0xff]
      %v252 = vld [vmem:[%s3 + $0x60] sm:$0xff]
      %v253 = vld [vmem:[%s3 + $0x68] sm:$0xff]
      %v254 = vld [vmem:[%s3 + $0x70] sm:$0xff]
      %v255 = vld [vmem:[%s3 + $0x78] sm:$0xff]
      %256 = vmatprep.subr.mxu0 0.0
      %257 = vmatpush1.msra.mxu0 %v255
      %258 = vmatprep.subr.mxu0 0.0
      %259 = vmatpush1.msra.mxu0 %v254
      %260 = vmatprep.subr.mxu0 0.0
      %261 = vmatpush1.msra.mxu0 %v253
      %262 = vmatprep.subr.mxu0 0.0
      %263 = vmatpush1.msra.mxu0 %v252
      %264 = vmatprep.subr.mxu0 0.0
      %265 = vmatpush1.msra.mxu0 %v251
      %266 = vmatprep.subr.mxu0 0.0
      %267 = vmatpush1.msra.mxu0 %v250
      %268 = vmatprep.subr.mxu0 0.0
      %269 = vmatpush1.msra.mxu0 %v249
      %270 = vmatprep.subr.mxu0 0.0
      %271 = vmatpush1.msra.mxu0 %v248
      %272 = vmatprep.subr.mxu0 0.0
      %273 = vmatpush1.msra.mxu0 %v247
      %274 = vmatprep.subr.mxu0 0.0
      %275 = vmatpush1.msra.mxu0 %v246
      %276 = vmatprep.subr.mxu0 0.0
      %277 = vmatpush1.msra.mxu0 %v245
      %278 = vmatprep.subr.mxu0 0.0
      %279 = vmatpush1.msra.mxu0 %v244
      %280 = vmatprep.subr.mxu0 0.0
      %281 = vmatpush1.msra.mxu0 %v243
      %282 = vmatprep.subr.mxu0 0.0
      %283 = vmatpush1.msra.mxu0 %v242
      %284 = vmatprep.subr.mxu0 0.0
      %285 = vmatpush1.msra.mxu0 %v241
      %286 = vmatprep.subr.mxu0 0.0
      %287 = vmatpush1.msra.mxu0 %v240
      %288 = vmatprep.subr.mxu0 0.0
      %289 = vmatpush2.msra.mxu0 0.0
      %290 = vmatprep.subr.mxu0 0.0
      %291 = vmatpush2.msra.mxu0 0.0
      %292 = vmatprep.subr.mxu0 0.0
      %293 = vmatpush2.msra.mxu0 0.0
      %294 = vmatprep.subr.mxu0 0.0
      %295 = vmatpush2.msra.mxu0 0.0
      %296 = vmatprep.subr.mxu0 0.0
      %297 = vmatpush2.msra.mxu0 0.0
      %298 = vmatprep.subr.mxu0 0.0
      %299 = vmatpush2.msra.mxu0 0.0
      %300 = vmatprep.subr.mxu0 0.0
      %301 = vmatpush2.msra.mxu0 0.0
      %302 = vmatprep.subr.mxu0 0.0
      %303 = vmatpush2.msra.mxu0 0.0
      %304 = vmatprep.subr.mxu0 0.0
      %305 = vmatpush2.msra.mxu0 0.0
      %306 = vmatprep.subr.mxu0 0.0
      %307 = vmatpush2.msra.mxu0 0.0
      %308 = vmatprep.subr.mxu0 0.0
      %309 = vmatpush2.msra.mxu0 0.0
      %310 = vmatprep.subr.mxu0 0.0
      %311 = vmatpush2.msra.mxu0 0.0
      %312 = vmatprep.subr.mxu0 0.0
      %313 = vmatpush2.msra.mxu0 0.0
      %314 = vmatprep.subr.mxu0 0.0
      %315 = vmatpush2.msra.mxu0 0.0
      %316 = vmatprep.subr.mxu0 0.0
      %317 = vmatpush2.msra.mxu0 0.0
      %318 = vmatprep.subr.mxu0 0.0
      %319 = vmatpush2.msra.mxu0 0.0
      %320 = vmatprep.mubr.f32.mxu0 0.0
      %321 = vmatmul.mubr.f32.gmra.mxu0 %v232
      %v322 = vpop.f32.mrf.mxu0
      %v323 = vadd.f32 0.0, %v322
      %v324 = vpop.f32.mrf.mxu0
      %325 = vmatprep.mubr.f32.mxu0 0.0
      %326 = vmatmul.mubr.f32.gmra.mxu0 %v233
      %v327 = vpop.f32.mrf.mxu0
      %v328 = vadd.f32 0.0, %v327
      %v329 = vpop.f32.mrf.mxu0
      %330 = vmatprep.mubr.f32.mxu0 0.0
      %331 = vmatmul.mubr.f32.gmra.mxu0 %v234
      %v332 = vpop.f32.mrf.mxu0
      %v333 = vadd.f32 0.0, %v332
      %v334 = vpop.f32.mrf.mxu0
      %335 = vmatprep.mubr.f32.mxu0 0.0
      %336 = vmatmul.mubr.f32.gmra.mxu0 %v235
      %v337 = vpop.f32.mrf.mxu0
      %v338 = vadd.f32 0.0, %v337
      %v339 = vpop.f32.mrf.mxu0
      %340 = vmatprep.mubr.f32.mxu0 0.0
      %341 = vmatmul.mubr.f32.gmra.mxu0 %v236
      %v342 = vpop.f32.mrf.mxu0
      %v343 = vadd.f32 0.0, %v342
      %v344 = vpop.f32.mrf.mxu0
      %345 = vmatprep.mubr.f32.mxu0 0.0
      %346 = vmatmul.mubr.f32.gmra.mxu0 %v237
      %v347 = vpop.f32.mrf.mxu0
      %v348 = vadd.f32 0.0, %v347
      %v349 = vpop.f32.mrf.mxu0
      %350 = vmatprep.mubr.f32.mxu0 0.0
      %351 = vmatmul.mubr.f32.gmra.mxu0 %v238
      %v352 = vpop.f32.mrf.mxu0
      %v353 = vadd.f32 0.0, %v352
      %v354 = vpop.f32.mrf.mxu0
      %355 = vmatprep.mubr.f32.mxu0 0.0
      %356 = vmatmul.mubr.f32.gmra.mxu0 %v239
      %v357 = vpop.f32.mrf.mxu0
      %v358 = vadd.f32 0.0, %v357
      %v359 = vpop.f32.mrf.mxu0
      %360 = vdwg.mxu0
      %v361 = vstv %s231
      %vm362 = vcmp.lt.f32.partialorder %v323, %v361
      %vm363 = vcmp.lt.f32.partialorder %v328, %v361
      %vm364 = vcmp.lt.f32.partialorder %v333, %v361
      %vm365 = vcmp.lt.f32.partialorder %v338, %v361
      %vm366 = vcmp.lt.f32.partialorder %v343, %v361
      %vm367 = vcmp.lt.f32.partialorder %v348, %v361
      %vm368 = vcmp.lt.f32.partialorder %v353, %v361
      %vm369 = vcmp.lt.f32.partialorder %v358, %v361
      %v370 = vsub.f32 %v361, %v323
      %v371 = vsub.f32 %v361, %v328
      %v372 = vsub.f32 %v361, %v333
      %v373 = vsub.f32 %v361, %v338
      %v374 = vsub.f32 %v361, %v343
      %v375 = vsub.f32 %v361, %v348
      %v376 = vsub.f32 %v361, %v353
      %v377 = vsub.f32 %v361, %v358
      %v378 = vstv %s230
      %v379 = vmul.f32 %v370, %v378
      %v380 = vmul.f32 %v371, %v378
      %v381 = vmul.f32 %v372, %v378
      %v382 = vmul.f32 %v373, %v378
      %v383 = vmul.f32 %v374, %v378
      %v384 = vmul.f32 %v375, %v378
      %v385 = vmul.f32 %v376, %v378
      %v386 = vmul.f32 %v377, %v378
      %v387 = vsel %vm362, %v379, 0.0
      %v388 = vsel %vm363, %v380, 0.0
      %v389 = vsel %vm364, %v381, 0.0
      %v390 = vsel %vm365, %v382, 0.0
      %v391 = vsel %vm366, %v383, 0.0
      %v392 = vsel %vm367, %v384, 0.0
      %v393 = vsel %vm368, %v385, 0.0
      %v394 = vsel %vm369, %v386, 0.0
      %v395 = vld [vmem:[%s222] sm:$0xff]
      %v396 = vld [vmem:[%s222 + $0x8] sm:$0xff]
      %v397 = vld [vmem:[%s222 + $0x10] sm:$0xff]
      %v398 = vld [vmem:[%s222 + $0x18] sm:$0xff]
      %v399 = vld [vmem:[%s222 + $0x20] sm:$0xff]
      %v400 = vld [vmem:[%s222 + $0x28] sm:$0xff]
      %v401 = vld [vmem:[%s222 + $0x30] sm:$0xff]
      %v402 = vld [vmem:[%s222 + $0x38] sm:$0xff]
      %v403 = vld [vmem:[%s4] sm:$0xff]
      %vm404 = vcmask 64512
      %v406 = vsel %vm404, %v395, 0
      %v409 = vsel %vm404, %v396, 0
      %v412 = vsel %vm404, %v397, 0
      %v415 = vsel %vm404, %v398, 0
      %v418 = vsel %vm404, %v399, 0
      %v421 = vsel %vm404, %v400, 0
      %v424 = vsel %vm404, %v401, 0
      %v427 = vsel %vm404, %v402, 0
      %429 = vmatprep.subr.mxu0 0.0
      %430 = vmatpush1.msra.mxu0 0.0
      %431 = vmatprep.subr.mxu0 0.0
      %432 = vmatpush1.msra.mxu0 0.0
      %433 = vmatprep.subr.mxu0 0.0
      %434 = vmatpush1.msra.mxu0 0.0
      %435 = vmatprep.subr.mxu0 0.0
      %436 = vmatpush1.msra.mxu0 0.0
      %437 = vmatprep.subr.mxu0 0.0
      %438 = vmatpush1.msra.mxu0 0.0
      %439 = vmatprep.subr.mxu0 0.0
      %440 = vmatpush1.msra.mxu0 0.0
      %441 = vmatprep.subr.mxu0 0.0
      %442 = vmatpush1.msra.mxu0 0.0
      %443 = vmatprep.subr.mxu0 0.0
      %444 = vmatpush1.msra.mxu0 0.0
      %445 = vmatprep.subr.mxu0 0.0
      %446 = vmatpush1.msra.mxu0 0.0
      %447 = vmatprep.subr.mxu0 0.0
      %448 = vmatpush1.msra.mxu0 0.0
      %449 = vmatprep.subr.mxu0 0.0
      %450 = vmatpush1.msra.mxu0 0.0
      %451 = vmatprep.subr.mxu0 0.0
      %452 = vmatpush1.msra.mxu0 0.0
      %453 = vmatprep.subr.mxu0 0.0
      %454 = vmatpush1.msra.mxu0 0.0
      %455 = vmatprep.subr.mxu0 0.0
      %456 = vmatpush1.msra.mxu0 0.0
      %457 = vmatprep.subr.mxu0 0.0
      %458 = vmatpush1.msra.mxu0 0.0
      %459 = vmatprep.subr.mxu0 0.0
      %460 = vmatpush1.msra.mxu0 %v403
      %461 = vmatprep.subr.mxu0 0.0
      %462 = vmatpush2.msra.mxu0 0.0
      %463 = vmatprep.subr.mxu0 0.0
      %464 = vmatpush2.msra.mxu0 0.0
      %465 = vmatprep.subr.mxu0 0.0
      %466 = vmatpush2.msra.mxu0 0.0
      %467 = vmatprep.subr.mxu0 0.0
      %468 = vmatpush2.msra.mxu0 0.0
      %469 = vmatprep.subr.mxu0 0.0
      %470 = vmatpush2.msra.mxu0 0.0
      %471 = vmatprep.subr.mxu0 0.0
      %472 = vmatpush2.msra.mxu0 0.0
      %473 = vmatprep.subr.mxu0 0.0
      %474 = vmatpush2.msra.mxu0 0.0
      %475 = vmatprep.subr.mxu0 0.0
      %476 = vmatpush2.msra.mxu0 0.0
      %477 = vmatprep.subr.mxu0 0.0
      %478 = vmatpush2.msra.mxu0 0.0
      %479 = vmatprep.subr.mxu0 0.0
      %480 = vmatpush2.msra.mxu0 0.0
      %481 = vmatprep.subr.mxu0 0.0
      %482 = vmatpush2.msra.mxu0 0.0
      %483 = vmatprep.subr.mxu0 0.0
      %484 = vmatpush2.msra.mxu0 0.0
      %485 = vmatprep.subr.mxu0 0.0
      %486 = vmatpush2.msra.mxu0 0.0
      %487 = vmatprep.subr.mxu0 0.0
      %488 = vmatpush2.msra.mxu0 0.0
      %489 = vmatprep.subr.mxu0 0.0
      %490 = vmatpush2.msra.mxu0 0.0
      %491 = vmatprep.subr.mxu0 0.0
      %492 = vmatpush2.msra.mxu0 0.0
      %493 = vmatprep.mubr.f32.mxu0 0.0
      %494 = vmatmul.mubr.f32.gmra.mxu0 %v406
      %v495 = vpop.f32.mrf.mxu0
      %v496 = vadd.f32 0.0, %v495
      %v497 = vpop.f32.mrf.mxu0
      %498 = vmatprep.mubr.f32.mxu0 0.0
      %499 = vmatmul.mubr.f32.gmra.mxu0 %v409
      %v500 = vpop.f32.mrf.mxu0
      %v501 = vadd.f32 0.0, %v500
      %v502 = vpop.f32.mrf.mxu0
      %503 = vmatprep.mubr.f32.mxu0 0.0
      %504 = vmatmul.mubr.f32.gmra.mxu0 %v412
      %v505 = vpop.f32.mrf.mxu0
      %v506 = vadd.f32 0.0, %v505
      %v507 = vpop.f32.mrf.mxu0
      %508 = vmatprep.mubr.f32.mxu0 0.0
      %509 = vmatmul.mubr.f32.gmra.mxu0 %v415
      %v510 = vpop.f32.mrf.mxu0
      %v511 = vadd.f32 0.0, %v510
      %v512 = vpop.f32.mrf.mxu0
      %513 = vmatprep.mubr.f32.mxu0 0.0
      %514 = vmatmul.mubr.f32.gmra.mxu0 %v418
      %v515 = vpop.f32.mrf.mxu0
      %v516 = vadd.f32 0.0, %v515
      %v517 = vpop.f32.mrf.mxu0
      %518 = vmatprep.mubr.f32.mxu0 0.0
      %519 = vmatmul.mubr.f32.gmra.mxu0 %v421
      %v520 = vpop.f32.mrf.mxu0
      %v521 = vadd.f32 0.0, %v520
      %v522 = vpop.f32.mrf.mxu0
      %523 = vmatprep.mubr.f32.mxu0 0.0
      %524 = vmatmul.mubr.f32.gmra.mxu0 %v424
      %v525 = vpop.f32.mrf.mxu0
      %v526 = vadd.f32 0.0, %v525
      %v527 = vpop.f32.mrf.mxu0
      %528 = vmatprep.mubr.f32.mxu0 0.0
      %529 = vmatmul.mubr.f32.gmra.mxu0 %v427
      %v530 = vpop.f32.mrf.mxu0
      %v531 = vadd.f32 0.0, %v530
      %v532 = vpop.f32.mrf.mxu0
      %533 = vdwg.mxu0
      %v534 = vmul.f32 %v387, %v496
      %v535 = vmul.f32 %v388, %v501
      %v536 = vmul.f32 %v389, %v506
      %v537 = vmul.f32 %v390, %v511
      %v538 = vmul.f32 %v391, %v516
      %v539 = vmul.f32 %v392, %v521
      %v540 = vmul.f32 %v393, %v526
      %v541 = vmul.f32 %v394, %v531
      %542 = vst [vmem:[%s228] sm:$0xff] %v534
      %543 = vst [vmem:[%s228 + $0x8] sm:$0xff] %v535
      %544 = vst [vmem:[%s228 + $0x10] sm:$0xff] %v536
      %545 = vst [vmem:[%s228 + $0x18] sm:$0xff] %v537
      %546 = vst [vmem:[%s228 + $0x20] sm:$0xff] %v538
      %547 = vst [vmem:[%s228 + $0x28] sm:$0xff] %v539
      %548 = vst [vmem:[%s228 + $0x30] sm:$0xff] %v540
      %549 = vst [vmem:[%s228 + $0x38] sm:$0xff] %v541
      %s550 = smul.u32 8, %s22
      %p551 = scmp.lt.s32.totalorder %s550, 15
      %s552 = scalar_select %p551, %s550, 15
      %s553 = smul.addr %s552, 8
      %s554 = scalar_lea.vmem %s5, %s553
      // Predicated region
      $region37: #{lukasiewicz_boost_conorm.1} parent=35 // pred_check
        %p555 = pneg %p134
      $region38: #{lukasiewicz_boost_conorm.1} parent=35 // pred_check_branch
        %557 = sbr.rel (%p555) target = $region40
      $region39: #{lukasiewicz_boost_conorm.1} parent=35 // pred_region
        %s558 = smul.u32 8, %s22
      $region40: #{lukasiewicz_boost_conorm.1} parent=35 // pred_fallthru
        _
    $region36: #{lukasiewicz_boost_conorm.1} parent=5 // pred_fallthru
      _
    %p559 = scmp.le.s32.totalorder 2, %s17
    // Predicated region
    $region41: #{lukasiewicz_boost_conorm.1} parent=5 // pred_check
      %p560 = pneg %p559
    $region42: #{lukasiewicz_boost_conorm.1} parent=5 // pred_check_branch
      %562 = sbr.rel (%p560) target = $region44
    $region43: #{lukasiewicz_boost_conorm.1} parent=5 // pred_region
      %s563 = ssub.s32 %s17, 2
      // Predicated region
      $region45: #{lukasiewicz_boost_conorm.1} parent=43 // pred_check
        %p564 = pneg %p140
      $region46: #{lukasiewicz_boost_conorm.1} parent=43 // pred_check_branch
        %566 = sbr.rel (%p564) target = $region48
      $region47: #{lukasiewicz_boost_conorm.1} parent=43 // pred_region
        %s567 = smul.u32 8, %s23
        %p568 = scmp.lt.s32.totalorder %s567, 15
        %s569 = scalar_select %p568, %s567, 15
        %s570 = smul.addr %s569, 8
        %s571 = scalar_lea.vmem %s5, %s570
      $region48: #{lukasiewicz_boost_conorm.1} parent=43 // pred_fallthru
        _
    $region44: #{lukasiewicz_boost_conorm.1} parent=5 // pred_fallthru
      _
  $region6: #{lukasiewicz_boost_conorm.1} parent=0 // loop_footer
    %s21 = sadd.s32 1, %s17
  $region7: #{lukasiewicz_boost_conorm.1} parent=0 // loop_footer_branch
    %16 = sbr.rel target = $region3
  $region8: #{lukasiewicz_boost_conorm.1} parent=0 // loop_exit
    _

</llo_original>
